<compile_context>
chip_gen: v7x
topology: tpu7x:2x2x1
jax: 0.10.0
libtpu: 0.0.40
codegen_flags: <defaults>
</compile_context>

<pallas_src>
import functools

import jax
import jax.numpy as jnp
from jax import lax
from jax.experimental import pallas as pl
from jax.experimental.pallas import tpu as pltpu

LANE = 128                           # lane width
SUBLANE_ALIGN = 16                   # covers f32 (8) and bf16 (16) sublane packing
NEG_LARGE = -1e30                    # finite "-inf" for padded class columns (exp -> 0)
VMEM_BUDGET_BYTES = 24 * 1024 * 1024  # keep under v7x's 32 MiB scoped default
VMEM_LIMIT_BYTES = 32 * 1024 * 1024   # explicit scoped limit; safe on v5e/v6e/v7x


def _round_up(x, m):
    return (x + m - 1) // m * m


def _pick_tile_b(B, requested, D, C_pad, x_itemsize, w_itemsize):
    """Batch-tile size: large (amortize ~0.35us/step pipeline overhead), VMEM-
    budgeted, and split into >=2 tiles when the batch allows it so v7x's second
    TensorCore gets work via dimension_semantics=("parallel",)."""
    tb = _round_up(max(int(requested), SUBLANE_ALIGN), SUBLANE_ALIGN)
    if B >= 2 * SUBLANE_ALIGN:
        tb = min(tb, _round_up(pl.cdiv(B, 2), SUBLANE_ALIGN))
    # Double-buffered x & out blocks + (double-buffered) resident weight/bias.
    per_row = 2 * (D * x_itemsize + C_pad * 4)
    resident = 2 * (C_pad * D * w_itemsize + C_pad * 4)
    max_rows = max(SUBLANE_ALIGN, (VMEM_BUDGET_BYTES - resident) // per_row)
    tb = min(tb, (max_rows // SUBLANE_ALIGN) * SUBLANE_ALIGN)
    # Single-tile case: a full-extent batch block is always layout-legal.
    return min(tb, B)


def _classifier_kernel(x_ref, w_ref, b_ref, o_ref):
    # x_ref: (TILE_B, D)          — streamed batch tile (Pallas double-buffers the DMA)
    # w_ref: (C_PAD, D)           — resident weight, PyTorch (out, in) layout
    # b_ref: (1, C_PAD)  f32      — resident bias, padded entries = NEG_LARGE
    # o_ref: (TILE_B, C_PAD) f32  — lane-dense output tile (unmasked stores)
    #
    # logits = x @ W^T + b: contract the feature axis of both operands directly
    # on the MXU; accumulate in f32 even when x/W are held in bf16.
    logits = lax.dot_general(
        x_ref[...], w_ref[...],
        dimension_numbers=(((1,), (1,)), ((), ())),
        preferred_element_type=jnp.float32,
    ) + b_ref[...]   # padded class columns -> ~ -1e30 -> vanish in the logsumexp

    # Numerically stable LogSoftmax over the class (last) dim, all in f32
    # (v5e has no bf16 VPU/EUP path; f32 is the right precision here).
    m = jnp.max(logits, axis=-1, keepdims=True)
    shifted = logits - m
    lse = jnp.log(jnp.sum(jnp.exp(shifted), axis=-1, keepdims=True))
    o_ref[...] = shifted - lse


@functools.partial(jax.jit, static_argnames=("tile_b", "compute_dtype"))
def classifier_forward(x, weight, bias, *, tile_b=2048, compute_dtype=jnp.float32):
    """x: (B, D); weight: (C, D) (PyTorch layout); bias: (C,).

    compute_dtype: dtype of the MXU operands. jnp.bfloat16 is the recommended
    production setting on v6e/v7x (native-rate MXU, half the x HBM bytes);
    accumulation and the log-softmax stay in f32 either way.
    """
    B, D = x.shape
    C = weight.shape[0]
    C_pad = _round_up(C, LANE)   # 4 -> 128: lane-dense output, no masked vst path

    x = x.astype(compute_dtype)
    # One-time parameter padding (in a real model this lives at parameter-init
    # time, outside the hot path). The activation x is never padded.
    w_p = jnp.pad(weight, ((0, C_pad - C), (0, 0))).astype(compute_dtype)
    b_p = jnp.pad(bias.astype(jnp.float32), (0, C_pad - C),
                  constant_values=NEG_LARGE).reshape(1, C_pad)

    itemsize = jnp.dtype(compute_dtype).itemsize
    tb = _pick_tile_b(B, tile_b, D, C_pad, itemsize, itemsize)
    grid = (pl.cdiv(B, tb),)     # ragged last tile -> masked writeback, no B pad

    out = pl.pallas_call(
        _classifier_kernel,
        out_shape=jax.ShapeDtypeStruct((B, C_pad), jnp.float32),
        grid_spec=pltpu.PrefetchScalarGridSpec(
            num_scalar_prefetch=0,
            grid=grid,
            in_specs=[
                # x: streamed over batch tiles; full feature extent (no D pad),
                # Pallas overlaps the HBM->VMEM DMA of tile i+1 with compute of i.
                pl.BlockSpec((tb, D), lambda i: (i, 0)),
                # weight / bias: constant block index -> fetched once, resident
                # in VMEM. (The redundant second pipeline buffer is ~100 KiB of
                # dead VMEM; pl.Buffered(1) could reclaim it — not worth churn.)
                pl.BlockSpec((C_pad, D), lambda i: (0, 0)),
                pl.BlockSpec((1, C_pad), lambda i: (0, 0)),
            ],
            out_specs=pl.BlockSpec((tb, C_pad), lambda i: (i, 0)),
        ),
        compiler_params=pltpu.CompilerParams(
            # Batch tiles are independent -> shard across TensorCores (v7x).
            dimension_semantics=("parallel",),
            vmem_limit_bytes=VMEM_LIMIT_BYTES,
        ),
    )(x, w_p, b_p)

    # TODO(synk): in production, fuse the downstream consumer (argmax / NLL loss)
    # into the kernel or hand it the padded (B, C_pad) buffer instead of slicing.
    return out[:, :C]


if __name__ == "__main__":
    key = jax.random.PRNGKey(0)
    kx, kw, kb, kx2 = jax.random.split(key, 4)

    D, C = 200, 4                    # module defaults: input_dim=200, num_classes=4
    bound = 1.0 / (D ** 0.5)         # nn.Linear init: uniform(-1/sqrt(D), 1/sqrt(D))
    weight = jax.random.uniform(kw, (C, D), jnp.float32, -bound, bound)
    bias = jax.random.uniform(kb, (C,), jnp.float32, -bound, bound)

    def ref_fn(xx):
        return jax.nn.log_softmax(xx @ weight.T + bias, axis=1)

    # 1) Module-default tiny batch (B=2): single full-extent batch tile.
    x = jax.random.normal(kx, (2, D), dtype=jnp.float32)
    out = jax.block_until_ready(classifier_forward(x, weight, bias))
    assert out.shape == (2, C)
    assert jnp.allclose(out, ref_fn(x), atol=1e-5, rtol=1e-5), "f32 small-batch mismatch"

    # 2) Larger batch: multi-tile parallel grid + ragged (masked-writeback) tile.
    x2 = jax.random.normal(kx2, (300, D), dtype=jnp.float32)
    out2 = jax.block_until_ready(classifier_forward(x2, weight, bias))
    assert out2.shape == (300, C)
    assert jnp.allclose(out2, ref_fn(x2), atol=1e-5, rtol=1e-5), "f32 large-batch mismatch"

    # 3) bf16 MXU path (recommended on v6e/v7x); f32 accumulate + f32 softmax.
    out_bf = jax.block_until_ready(
        classifier_forward(x2, weight, bias, compute_dtype=jnp.bfloat16))
    assert jnp.allclose(out_bf, ref_fn(x2), atol=5e-2, rtol=0), "bf16 path mismatch"

    print("KERNEL_OK")
</pallas_src>

<mosaic_0001>
module attributes {stable_mosaic.version = 11 : i64} {
  func.func @_classifier_kernel(%arg0: i32, %arg1: memref<2x200xf32, #tpu.memory_space<vmem>>, %arg2: memref<128x200xf32, #tpu.memory_space<vmem>>, %arg3: memref<1x128xf32, #tpu.memory_space<vmem>>, %arg4: memref<2x128xf32, #tpu.memory_space<vmem>>) attributes {dimension_semantics = [#tpu.dimension_semantics<parallel>], iteration_bounds = array<i64: 1>, scalar_prefetch = 0 : i64, scratch_operands = 0 : i64, tpu.core_type = #tpu.core_type<tc>, window_params = [{transform_indices = @transform_0, window_bounds = array<i64: 2, 200>}, {pipeline_mode = #tpu.pipeline_mode<synchronous>, transform_indices = @transform_1, window_bounds = array<i64: 128, 200>}, {pipeline_mode = #tpu.pipeline_mode<synchronous>, transform_indices = @transform_2, window_bounds = array<i64: 1, 128>}, {transform_indices = @transform_3, window_bounds = array<i64: 2, 128>}]} {
    %c0 = arith.constant 0 : index
    %c0_0 = arith.constant 0 : index
    %0 = vector.load %arg1[%c0, %c0_0] : memref<2x200xf32, #tpu.memory_space<vmem>>, vector<2x200xf32>
    %c0_1 = arith.constant 0 : index
    %c0_2 = arith.constant 0 : index
    %1 = vector.load %arg2[%c0_1, %c0_2] : memref<128x200xf32, #tpu.memory_space<vmem>>, vector<128x200xf32>
    %cst = arith.constant dense<0.000000e+00> : vector<2x128xf32>
    %2 = tpu.matmul %0, %1, %cst {dimension_numbers = #tpu.dot_dimension_numbers<[1], [1], [0], [0], [0, 0, 1, 0], [], []>} : vector<2x200xf32>, vector<128x200xf32>, vector<2x128xf32> -> vector<2x128xf32>
    %c0_3 = arith.constant 0 : index
    %c0_4 = arith.constant 0 : index
    %3 = vector.load %arg3[%c0_3, %c0_4] : memref<1x128xf32, #tpu.memory_space<vmem>>, vector<1x128xf32>
    %4 = vector.broadcast %3 : vector<1x128xf32> to vector<2x128xf32>
    %5 = arith.addf %2, %4 : vector<2x128xf32>
    %cst_5 = arith.constant dense<0xFF800000> : vector<2xf32>
    %6 = vector.multi_reduction <maximumf>, %5, %cst_5 [1] : vector<2x128xf32> to vector<2xf32>
    %7 = vector.shape_cast %6 : vector<2xf32> to vector<2x1xf32>
    %8 = vector.broadcast %7 : vector<2x1xf32> to vector<2x128xf32>
    %9 = arith.subf %5, %8 : vector<2x128xf32>
    %10 = math.exp %9 : vector<2x128xf32>
    %cst_6 = arith.constant dense<0.000000e+00> : vector<2xf32>
    %11 = vector.multi_reduction <add>, %10, %cst_6 [1] : vector<2x128xf32> to vector<2xf32>
    %12 = vector.shape_cast %11 : vector<2xf32> to vector<2x1xf32>
    %13 = math.log %12 : vector<2x1xf32>
    %14 = vector.broadcast %13 : vector<2x1xf32> to vector<2x128xf32>
    %15 = arith.subf %9, %14 : vector<2x128xf32>
    %c0_7 = arith.constant 0 : index
    %c0_8 = arith.constant 0 : index
    %16 = vector.load %arg4[%c0_7, %c0_8] : memref<2x128xf32, #tpu.memory_space<vmem>>, vector<2x128xf32>
    tpu.vector_store %arg4[%c0_7, %c0_8], %15 {strides = array<i32>} : memref<2x128xf32, #tpu.memory_space<vmem>>, vector<2x128xf32>,
    return
  }
  func.func @transform_0(%arg0: i32) -> (i32, i32) {
    %c0_i32 = arith.constant 0 : i32
    %c0_i32_0 = arith.constant 0 : i32
    return %arg0, %c0_i32 : i32, i32
  }
  func.func @transform_1(%arg0: i32) -> (i32, i32) {
    %c0_i32 = arith.constant 0 : i32
    %c0_i32_0 = arith.constant 0 : i32
    %c0_i32_1 = arith.constant 0 : i32
    return %c0_i32, %c0_i32_0 : i32, i32
  }
  func.func @transform_2(%arg0: i32) -> (i32, i32) {
    %c0_i32 = arith.constant 0 : i32
    %c0_i32_0 = arith.constant 0 : i32
    %c0_i32_1 = arith.constant 0 : i32
    return %c0_i32, %c0_i32_0 : i32, i32
  }
  func.func @transform_3(%arg0: i32) -> (i32, i32) {
    %c0_i32 = arith.constant 0 : i32
    %c0_i32_0 = arith.constant 0 : i32
    return %arg0, %c0_i32 : i32, i32
  }
}

</mosaic_0001>

<llo_original>
// kernel: classifier_forward.1
$region0: #{classifier_forward.1}
  #allocation0 [shape = 'u32[]', space=smem, size = 0x4, offset = 0x4, fixed_abs, tag = 'smem constant byte address 0x4 - core index']
  #allocation1 [shape = 'u32[144,128]{1,0:T(1,128)}', space=vmem, size = 0x12000, scoped, tag = 'internal scratch']
  %s0 = inlined_call_operand.vmem [shape: f32[2,200], index: 0, kind: input, shape index: {}]
  %s1 = inlined_call_operand.vmem [shape: f32[128,200], index: 1, kind: input, shape index: {}]
  %s2 = inlined_call_operand.vmem [shape: f32[1,128], index: 2, kind: input, shape index: {}]
  %s3 = inlined_call_operand.hbm [shape: f32[2,128], index: 3, kind: output, shape index: {}]
  %s4 = sld [smem:[#allocation0]]
  $region22: #{classifier_forward.1} parent=0
    _
  %s6 = ssub.s32 1, %s4
  %s7 = scalar_select 0, %s6, %s4
  $region1: #{classifier_forward.1} parent=0
    #allocation2 [shape = 'u8[1024]{0}', space=vmem, size = 0x400, scoped, tag = 'output window, operand 0, single buffered']
    #allocation3 [shape = 's32[1]{0}', space=sflag, size = 0x4, scoped, tag = 'scoped memory for classifier_forward.1']
    %8 = vsyncpa [#allocation3], 0
    // Predicated region
    $region2: #{classifier_forward.1} parent=1 // pred_check
      _
    $region3: #{classifier_forward.1} parent=1 // pred_check_branch
      %10 = sbr.rel (0) target = $region5
    $region4: #{classifier_forward.1} parent=1 // pred_region
      _
    $region5: #{classifier_forward.1} parent=1 // pred_fallthru
      _
    // Predicated region
    $region6: #{classifier_forward.1} parent=1 // pred_check
      _
    $region7: #{classifier_forward.1} parent=1 // pred_check_branch
      %12 = sbr.rel (0) target = $region9
    $region8: #{classifier_forward.1} parent=1 // pred_region
      _
    $region9: #{classifier_forward.1} parent=1 // pred_fallthru
      _
    // Predicated region
    $region10: #{classifier_forward.1} parent=1 // pred_check
      _
    $region11: #{classifier_forward.1} parent=1 // pred_check_branch
      %14 = sbr.rel (0) target = $region13
    $region12: #{classifier_forward.1} parent=1 // pred_region
      _
    $region13: #{classifier_forward.1} parent=1 // pred_fallthru
      _
    %v15 = vld [vmem:[%s0] sm:$0xf]
    %v16 = vld [vmem:[%s1] sm:$0xff]
    %v17 = vld [vmem:[%s1 + $0x8] sm:$0xff]
    %v18 = vld [vmem:[%s1 + $0x10] sm:$0xff]
    %v19 = vld [vmem:[%s1 + $0x18] sm:$0xff]
    %v20 = vld [vmem:[%s1 + $0x20] sm:$0xff]
    %v21 = vld [vmem:[%s1 + $0x28] sm:$0xff]
    %v22 = vld [vmem:[%s1 + $0x30] sm:$0xff]
    %v23 = vld [vmem:[%s1 + $0x38] sm:$0xff]
    %v24 = vld [vmem:[%s1 + $0x40] sm:$0xff]
    %v25 = vld [vmem:[%s1 + $0x48] sm:$0xff]
    %v26 = vld [vmem:[%s1 + $0x50] sm:$0xff]
    %v27 = vld [vmem:[%s1 + $0x58] sm:$0xff]
    %v28 = vld [vmem:[%s1 + $0x60] sm:$0xff]
    %v29 = vld [vmem:[%s1 + $0x68] sm:$0xff]
    %v30 = vld [vmem:[%s1 + $0x70] sm:$0xff]
    %v31 = vld [vmem:[%s1 + $0x78] sm:$0xff]
    %v32 = vld [vmem:[%s1 + $0x80] sm:$0xff]
    %v33 = vld [vmem:[%s1 + $0x88] sm:$0xff]
    %v34 = vld [vmem:[%s1 + $0x90] sm:$0xff]
    %v35 = vld [vmem:[%s1 + $0x98] sm:$0xff]
    %v36 = vld [vmem:[%s1 + $0xa0] sm:$0xff]
    %v37 = vld [vmem:[%s1 + $0xa8] sm:$0xff]
    %v38 = vld [vmem:[%s1 + $0xb0] sm:$0xff]
    %v39 = vld [vmem:[%s1 + $0xb8] sm:$0xff]
    %v40 = vld [vmem:[%s1 + $0xc0] sm:$0xff]
    %v41 = vld [vmem:[%s1 + $0xc8] sm:$0xff]
    %v42 = vld [vmem:[%s1 + $0xd0] sm:$0xff]
    %v43 = vld [vmem:[%s1 + $0xd8] sm:$0xff]
    %v44 = vld [vmem:[%s1 + $0xe0] sm:$0xff]
    %v45 = vld [vmem:[%s1 + $0xe8] sm:$0xff]
    %v46 = vld [vmem:[%s1 + $0xf0] sm:$0xff]
    %v47 = vld [vmem:[%s1 + $0xf8] sm:$0xff]
    %v48 = vld [vmem:[%s2] sm:$0x1]
    %v50 = vlaneseq
    %v51 = vshrl.u32 %v50, 7
    %v52 = vsub.s32 0, %v51
    %v53 = vrot.slane %v48, %v52
    %v57 = vunpack.c.l.s4 1983009808
    %v58 = vunpack.c.0.s8 %v57
    %v59 = vlaneseq
    %v60 = vshrl.u32 %v59, 7
    %v61 = vsub.s32 %v58, %v60
    %v62 = vrot.slane %v15, %v61
    %v63 = vcombine.high %v62, %v62
    %vm65 = vcmask 588800
    %v66 = vsel %vm65, %v63, 0
    %v69 = vsel %vm65, %v17, 0
    %v72 = vsel %vm65, %v19, 0
    %v75 = vsel %vm65, %v21, 0
    %v78 = vsel %vm65, %v23, 0
    %v81 = vsel %vm65, %v25, 0
    %v84 = vsel %vm65, %v27, 0
    %v87 = vsel %vm65, %v29, 0
    %v90 = vsel %vm65, %v31, 0
    %v93 = vsel %vm65, %v33, 0
    %v96 = vsel %vm65, %v35, 0
    %v99 = vsel %vm65, %v37, 0
    %v102 = vsel %vm65, %v39, 0
    %v105 = vsel %vm65, %v41, 0
    %v108 = vsel %vm65, %v43, 0
    %v111 = vsel %vm65, %v45, 0
    %v114 = vsel %vm65, %v47, 0
    %116 = vmatprep.subr.mxu0 %v69
    %117 = vmatpush1.xpose.msra.mxu0 %v16
    %118 = vmatprep.subr.mxu0 %v72
    %119 = vmatpush1.xpose.msra.mxu0 %v18
    %120 = vmatprep.subr.mxu0 %v75
    %121 = vmatpush1.xpose.msra.mxu0 %v20
    %122 = vmatprep.subr.mxu0 %v78
    %123 = vmatpush1.xpose.msra.mxu0 %v22
    %124 = vmatprep.subr.mxu0 %v81
    %125 = vmatpush1.xpose.msra.mxu0 %v24
    %126 = vmatprep.subr.mxu0 %v84
    %127 = vmatpush1.xpose.msra.mxu0 %v26
    %128 = vmatprep.subr.mxu0 %v87
    %129 = vmatpush1.xpose.msra.mxu0 %v28
    %130 = vmatprep.subr.mxu0 %v90
    %131 = vmatpush1.xpose.msra.mxu0 %v30
    %132 = vmatprep.subr.mxu0 %v93
    %133 = vmatpush1.xpose.msra.mxu0 %v32
    %134 = vmatprep.subr.mxu0 %v96
    %135 = vmatpush1.xpose.msra.mxu0 %v34
    %136 = vmatprep.subr.mxu0 %v99
    %137 = vmatpush1.xpose.msra.mxu0 %v36
    %138 = vmatprep.subr.mxu0 %v102
    %139 = vmatpush1.xpose.msra.mxu0 %v38
    %140 = vmatprep.subr.mxu0 %v105
    %141 = vmatpush1.xpose.msra.mxu0 %v40
    %142 = vmatprep.subr.mxu0 %v108
    %143 = vmatpush1.xpose.msra.mxu0 %v42
    %144 = vmatprep.subr.mxu0 %v111
    %145 = vmatpush1.xpose.msra.mxu0 %v44
    %146 = vmatprep.subr.mxu0 %v114
    %147 = vmatpush1.xpose.msra.mxu0 %v46
    %148 = vmatprep.subr.mxu0 0.0
    %149 = vmatpush1.xpose.msra.mxu0 0.0
    %150 = vmatprep.subr.mxu0 0.0
    %151 = vmatpush1.xpose.msra.mxu0 0.0
    %152 = vmatprep.subr.mxu0 0.0
    %153 = vmatpush1.xpose.msra.mxu0 0.0
    %154 = vmatprep.subr.mxu0 0.0
    %155 = vmatpush1.xpose.msra.mxu0 0.0
    %156 = vmatprep.subr.mxu0 0.0
    %157 = vmatpush1.xpose.msra.mxu0 0.0
    %158 = vmatprep.subr.mxu0 0.0
    %159 = vmatpush1.xpose.msra.mxu0 0.0
    %160 = vmatprep.subr.mxu0 0.0
    %161 = vmatpush1.xpose.msra.mxu0 0.0
    %162 = vmatprep.subr.mxu0 0.0
    %163 = vmatpush1.xpose.msra.mxu0 0.0
    %164 = vmatprep.subr.mxu0 0.0
    %165 = vmatpush1.xpose.msra.mxu0 0.0
    %166 = vmatprep.subr.mxu0 0.0
    %167 = vmatpush1.xpose.msra.mxu0 0.0
    %168 = vmatprep.subr.mxu0 0.0
    %169 = vmatpush1.xpose.msra.mxu0 0.0
    %170 = vmatprep.subr.mxu0 0.0
    %171 = vmatpush1.xpose.msra.mxu0 0.0
    %172 = vmatprep.subr.mxu0 0.0
    %173 = vmatpush1.xpose.msra.mxu0 0.0
    %174 = vmatprep.subr.mxu0 0.0
    %175 = vmatpush1.xpose.msra.mxu0 0.0
    %176 = vmatprep.subr.mxu0 0.0
    %177 = vmatpush1.xpose.msra.mxu0 0.0
    %178 = vmatprep.subr.mxu0 0.0
    %179 = vmatpush1.xpose.msra.mxu0 0.0
    %180 = vmatprep.mubr.f32.mxu0 %v66
    %181 = vmatmul.mubr.f32.gmra.mrb[0].mxu0 %v62
    %v182 = vpop.f32.mrb[0].mxu0
    %v183 = vadd.f32 %v53, %v182
    %v184 = vpop.f32.mrb[0].mxu0
    %185 = vdwg.mxu0
    %vm186 = vcmask 1041408
    %v187 = vsel %vm186, %v183, -inf
    %188 = vmax.xlane.f32.xlu0 %v187
    %v189 = vpop.xlane.xlu0 %188
    %v190 = vsub.f32 %v183, %v189
    %v191 = vmul.f32 %v190, 1.442695
    %v192 = vpow.pop %v191
    %v193 = vsel %vm186, %v192, 0.0
    %194 = vadd.xlane.f32.xlu0 %v193
    %v195 = vpop.xlane.xlu0 %194
    %v196 = vlog2.pop %v195
    %v197 = vmul.f32 %v196, 0.6931472
    %v198 = vsub.f32 %v190, %v197
    %199 = vst [vmem:[#allocation2] sm:$0x3] %v198
    // Predicated region
    $region14: #{classifier_forward.1} parent=1 // pred_check
      _
    $region15: #{classifier_forward.1} parent=1 // pred_check_branch
      %201 = sbr.rel (0) target = $region17
    $region16: #{classifier_forward.1} parent=1 // pred_region
      %s203 = ssub.s32 32, 32
      %204 = vsyncadd [#allocation3], %s203
      %s206 = sshll.u32 [#allocation2], 4
      %s207 = int_to_ptr.vmem [resolvable:$true] %s206
      %209 = dma.vmem_to_hbm [thread:$0]  %s207, 32, %s3, [#allocation3]
    $region17: #{classifier_forward.1} parent=1 // pred_fallthru
      _
    // Predicated region
    $region18: #{classifier_forward.1} parent=1 // pred_check
      _
    $region19: #{classifier_forward.1} parent=1 // pred_check_branch
      %211 = sbr.rel (0) target = $region21
    $region20: #{classifier_forward.1} parent=1 // pred_region
      %212 = dma.done [#allocation3], 32
    $region21: #{classifier_forward.1} parent=1 // pred_fallthru
      _
    %213 = vsyncpa [#allocation3], 1

</llo_original>
